<compile_context>
chip_gen: v7x
topology: tpu7x:2x2x1
jax: 0.10.0
libtpu: 0.0.40
codegen_flags: <defaults>
</compile_context>

<pallas_src>
import functools

import jax
import jax.numpy as jnp
from jax.experimental import pallas as pl
from jax.experimental.pallas import tpu as pltpu

TWO_PI = 2.0 * jnp.pi

# Conservative VMEM sizing that works across generations:
#   v5e/v6e: 128 MiB physical;  v7x: 64 MiB physical per TensorCore.
_VMEM_LIMIT_BYTES = 56 * 1024 * 1024   # explicit scoped-VMEM limit (headroom on v7x)
_VMEM_BUDGET_BYTES = 44 * 1024 * 1024  # what the tile derivation may consume


def harmonic_kernel(params_ref, mask_ref, x_ref, o_ref, *, matmul_dtype):
    # params_ref: (8, In)  rows: 0=alpha, 1=beta, 2=kappa/(2pi), 3=2pi*gamma,
    #             4=delta, 5-7 zero padding.  Resident, single-buffered.
    # mask_ref:   (In, tn) mask tile (fully resident when tn == OutPad).
    # x_ref:      (tm, In) batch tile.
    # o_ref:      (tm, tn) lane-dense output tile.
    x = x_ref[...]                       # (tm, In) f32
    p = params_ref[...]                  # (8, In)  f32

    a = p[0:1, :]                        # (1, In) -> broadcast over batch rows
    b = p[1:2, :]
    k2 = p[2:3, :]                       # kappa / (2*pi)   (pre-folded)
    g2 = p[3:4, :]                       # 2*pi * gamma     (pre-folded)
    d = p[4:5, :]

    # forget + linear + extsin, VPU + EUP (sin) path, all f32.
    updated = a * x + b + k2 * jnp.sin(g2 * x + d)   # (tm, In)

    # MXU matmul; bf16 inputs optional, accumulation always f32.
    o_ref[...] = jnp.dot(updated.astype(matmul_dtype),
                         mask_ref[...].astype(matmul_dtype),
                         preferred_element_type=jnp.float32)


def prepare_harmonic_params(alphas, betas, kappas, gammas, deltas, mask, *,
                            matmul_dtype=jnp.float32):
    """One-time packing of the model parameters (hoisted out of the call path).

    Returns (packed_params (8, In) f32, padded mask (In, OutPad), out_size).
    """
    in_size, out_size = mask.shape
    zeros = jnp.zeros((in_size,), jnp.float32)
    packed = jnp.stack([
        alphas.astype(jnp.float32),
        betas.astype(jnp.float32),
        kappas.astype(jnp.float32) * (1.0 / TWO_PI),
        gammas.astype(jnp.float32) * TWO_PI,
        deltas.astype(jnp.float32),
        zeros, zeros, zeros,
    ])                                                   # (8, In)

    out_pad = 128 * pl.cdiv(out_size, 128)               # lane-dense stores
    mask_p = mask.astype(matmul_dtype)
    if out_pad != out_size:
        mask_p = jnp.pad(mask_p, ((0, 0), (0, out_pad - out_size)))
    return packed, mask_p, out_size


def _derive_tiles(batch, in_size, out_pad, mask_itemsize):
    """Pick (tm, tn, mask_buffer_count) from the VMEM budget."""
    budget = _VMEM_BUDGET_BYTES
    budget -= 8 * in_size * 4                            # packed params, 1 buffer

    mask_row_bytes = in_size * mask_itemsize
    mask_full_bytes = mask_row_bytes * out_pad
    if mask_full_bytes <= budget // 3:
        # Mask fully resident, single-buffered (constant index_map -> one DMA).
        tn = out_pad
        mask_buffers = 1
        budget -= mask_full_bytes
    else:
        # N-tile the mask; its block index changes with j, so double-buffer it.
        mask_buffers = 2
        tn_cap = (budget // 3) // (2 * mask_row_bytes)
        tn = max(128, (tn_cap // 128) * 128)
        tn = min(tn, out_pad)
        budget -= 2 * mask_row_bytes * tn

    # Remaining budget: x tile (2 buffers) + output tile (2 buffers), both f32.
    per_row_bytes = 2 * in_size * 4 + 2 * tn * 4
    tm_cap = max(8, (budget // per_row_bytes // 8) * 8)
    if tm_cap >= batch:
        tm = batch          # one block covers the whole batch (full-dim block)
    else:
        tm = tm_cap         # multiple of 8; tail block handled by Pallas
    return tm, tn, mask_buffers


def harmonic_nn_apply(x, packed_params, mask_padded, out_size):
    """Forward pass given pre-packed params / pre-padded mask."""
    if x.ndim == 3:
        x = x[0]            # matches `updated = updated[0]` in the reference
    x = x.astype(jnp.float32)
    batch, in_size = x.shape
    out_pad = mask_padded.shape[1]
    matmul_dtype = mask_padded.dtype

    tm, tn, mask_buffers = _derive_tiles(batch, in_size, out_pad,
                                         mask_padded.dtype.itemsize)
    grid = (pl.cdiv(batch, tm), pl.cdiv(out_pad, tn))

    kernel = functools.partial(harmonic_kernel, matmul_dtype=matmul_dtype)

    out = pl.pallas_call(
        kernel,
        out_shape=jax.ShapeDtypeStruct((batch, out_pad), jnp.float32),
        grid=grid,
        in_specs=[
            # Packed params: resident, single-buffered (one DMA total).
            pl.BlockSpec((8, in_size), lambda i, j: (0, 0),
                         pipeline_mode=pl.Buffered(1)),
            # Mask: resident+single-buffered when tn == OutPad, else N-tiled
            # and double-buffered.
            pl.BlockSpec((in_size, tn), lambda i, j: (0, j),
                         pipeline_mode=pl.Buffered(mask_buffers)),
            # Batch tile of x (default double-buffering for DMA/compute overlap).
            pl.BlockSpec((tm, in_size), lambda i, j: (i, 0)),
        ],
        out_specs=pl.BlockSpec((tm, tn), lambda i, j: (i, j)),
        compiler_params=pltpu.CompilerParams(
            dimension_semantics=("parallel", "parallel"),
            vmem_limit_bytes=_VMEM_LIMIT_BYTES),
    )(packed_params, mask_padded, x)

    return out[:, :out_size]


def harmonic_nn_forward(x, alphas, betas, kappas, gammas, deltas, mask, *,
                        matmul_dtype=jnp.float32):
    """Convenience one-shot wrapper (packs params + pads mask, then applies)."""
    packed, mask_p, out_size = prepare_harmonic_params(
        alphas, betas, kappas, gammas, deltas, mask, matmul_dtype=matmul_dtype)
    return harmonic_nn_apply(x, packed, mask_p, out_size)


if __name__ == "__main__":
    batch, input_size, output_size = 8, 32, 16

    key = jax.random.PRNGKey(0)
    kx, ka, kb, kk, kg, kd, km = jax.random.split(key, 7)

    x = jax.random.normal(kx, (batch, input_size), dtype=jnp.float32)
    # torch.rand -> uniform [0, 1)
    alphas = jax.random.uniform(ka, (input_size,), dtype=jnp.float32)
    betas = jax.random.uniform(kb, (input_size,), dtype=jnp.float32)
    kappas = jax.random.uniform(kk, (input_size,), dtype=jnp.float32)
    gammas = jax.random.uniform(kg, (input_size,), dtype=jnp.float32)
    deltas = jax.random.uniform(kd, (input_size,), dtype=jnp.float32)
    mask = jax.random.uniform(km, (input_size, output_size), dtype=jnp.float32)

    # One-time parameter prep (hoisted out of the steady-state call path).
    packed_params, mask_padded, out_size = prepare_harmonic_params(
        alphas, betas, kappas, gammas, deltas, mask)

    out = harmonic_nn_apply(x, packed_params, mask_padded, out_size)
    out = jax.block_until_ready(out)

    # Pure-JAX reference check (f32; PyTorch ref uses f64 for the final mm).
    updated_ref = (alphas * x + betas
                   + (kappas / TWO_PI) * jnp.sin(TWO_PI * gammas * x + deltas))
    ref = updated_ref @ mask
    assert out.shape == (batch, output_size)
    assert jnp.allclose(out, ref, atol=1e-4, rtol=1e-4)

    print("KERNEL_OK")
</pallas_src>

<mosaic_0001>
module attributes {stable_mosaic.version = 11 : i64} {
  func.func @harmonic_kernel(%arg0: i32, %arg1: i32, %arg2: memref<8x32xf32, #tpu.memory_space<vmem>>, %arg3: memref<32x128xf32, #tpu.memory_space<vmem>>, %arg4: memref<8x32xf32, #tpu.memory_space<vmem>>, %arg5: memref<8x128xf32, #tpu.memory_space<vmem>>) attributes {dimension_semantics = [#tpu.dimension_semantics<parallel>, #tpu.dimension_semantics<parallel>], iteration_bounds = array<i64: 1, 1>, scalar_prefetch = 0 : i64, scratch_operands = 0 : i64, tpu.core_type = #tpu.core_type<tc>, window_params = [{pipeline_mode = #tpu.pipeline_mode<synchronous>, transform_indices = @transform_0, window_bounds = array<i64: 8, 32>}, {pipeline_mode = #tpu.pipeline_mode<synchronous>, transform_indices = @transform_1, window_bounds = array<i64: 32, 128>}, {transform_indices = @transform_2, window_bounds = array<i64: 8, 32>}, {transform_indices = @transform_3, window_bounds = array<i64: 8, 128>}]} {
    %c0 = arith.constant 0 : index
    %c0_0 = arith.constant 0 : index
    %0 = vector.load %arg4[%c0, %c0_0] : memref<8x32xf32, #tpu.memory_space<vmem>>, vector<8x32xf32>
    %c0_1 = arith.constant 0 : index
    %c0_2 = arith.constant 0 : index
    %1 = vector.load %arg2[%c0_1, %c0_2] : memref<8x32xf32, #tpu.memory_space<vmem>>, vector<8x32xf32>
    %2 = vector.extract_strided_slice %1 {offsets = [0, 0], sizes = [1, 32], strides = [1, 1]} : vector<8x32xf32> to vector<1x32xf32>
    %3 = vector.extract_strided_slice %1 {offsets = [1, 0], sizes = [1, 32], strides = [1, 1]} : vector<8x32xf32> to vector<1x32xf32>
    %4 = vector.extract_strided_slice %1 {offsets = [2, 0], sizes = [1, 32], strides = [1, 1]} : vector<8x32xf32> to vector<1x32xf32>
    %5 = vector.extract_strided_slice %1 {offsets = [3, 0], sizes = [1, 32], strides = [1, 1]} : vector<8x32xf32> to vector<1x32xf32>
    %6 = vector.extract_strided_slice %1 {offsets = [4, 0], sizes = [1, 32], strides = [1, 1]} : vector<8x32xf32> to vector<1x32xf32>
    %7 = vector.broadcast %2 : vector<1x32xf32> to vector<8x32xf32>
    %8 = arith.mulf %7, %0 : vector<8x32xf32>
    %9 = vector.broadcast %3 : vector<1x32xf32> to vector<8x32xf32>
    %10 = arith.addf %8, %9 : vector<8x32xf32>
    %11 = vector.broadcast %5 : vector<1x32xf32> to vector<8x32xf32>
    %12 = arith.mulf %11, %0 : vector<8x32xf32>
    %13 = vector.broadcast %6 : vector<1x32xf32> to vector<8x32xf32>
    %14 = arith.addf %12, %13 : vector<8x32xf32>
    %15 = math.sin %14 : vector<8x32xf32>
    %16 = vector.broadcast %4 : vector<1x32xf32> to vector<8x32xf32>
    %17 = arith.mulf %16, %15 : vector<8x32xf32>
    %18 = arith.addf %10, %17 : vector<8x32xf32>
    %c0_3 = arith.constant 0 : index
    %c0_4 = arith.constant 0 : index
    %19 = vector.load %arg3[%c0_3, %c0_4] : memref<32x128xf32, #tpu.memory_space<vmem>>, vector<32x128xf32>
    %cst = arith.constant dense<0.000000e+00> : vector<8x128xf32>
    %20 = tpu.matmul %18, %19, %cst {dimension_numbers = #tpu.dot_dimension_numbers<[1], [0], [0], [1], [0, 0, 1, 1], [], []>} : vector<8x32xf32>, vector<32x128xf32>, vector<8x128xf32> -> vector<8x128xf32>
    %c0_5 = arith.constant 0 : index
    %c0_6 = arith.constant 0 : index
    %21 = vector.load %arg5[%c0_5, %c0_6] : memref<8x128xf32, #tpu.memory_space<vmem>>, vector<8x128xf32>
    tpu.vector_store %arg5[%c0_5, %c0_6], %20 {strides = array<i32>} : memref<8x128xf32, #tpu.memory_space<vmem>>, vector<8x128xf32>,
    return
  }
  func.func @transform_0(%arg0: i32, %arg1: i32) -> (i32, i32) {
    %c0_i32 = arith.constant 0 : i32
    %c0_i32_0 = arith.constant 0 : i32
    %c0_i32_1 = arith.constant 0 : i32
    return %c0_i32, %c0_i32_0 : i32, i32
  }
  func.func @transform_1(%arg0: i32, %arg1: i32) -> (i32, i32) {
    %c0_i32 = arith.constant 0 : i32
    %c0_i32_0 = arith.constant 0 : i32
    return %c0_i32, %arg1 : i32, i32
  }
  func.func @transform_2(%arg0: i32, %arg1: i32) -> (i32, i32) {
    %c0_i32 = arith.constant 0 : i32
    %c0_i32_0 = arith.constant 0 : i32
    return %arg0, %c0_i32 : i32, i32
  }
  func.func @transform_3(%arg0: i32, %arg1: i32) -> (i32, i32) {
    %c0_i32 = arith.constant 0 : i32
    return %arg0, %arg1 : i32, i32
  }
}

</mosaic_0001>

<llo_original>
// kernel: tpu_custom_call.1
$region0: #{tpu_custom_call.1}
  #allocation0 [shape = 'u32[]', space=smem, size = 0x4, offset = 0x4, fixed_abs, tag = 'smem constant byte address 0x4 - core index']
  #allocation1 [shape = 'u32[144,128]{1,0:T(1,128)}', space=vmem, size = 0x12000, scoped, tag = 'internal scratch']
  %s0 = inlined_call_operand.hbm [shape: f32[8,32], index: 0, kind: input, shape index: {}]
  %s1 = inlined_call_operand.hbm [shape: f32[32,128], index: 1, kind: input, shape index: {}]
  %s2 = inlined_call_operand.hbm [shape: f32[8,32], index: 2, kind: input, shape index: {}]
  %s3 = inlined_call_operand.hbm [shape: f32[8,128], index: 3, kind: output, shape index: {}]
  %s4 = sld [smem:[#allocation0]]
  $region34: #{tpu_custom_call.1} parent=0
    _
  %s6 = ssub.s32 1, %s4
  %s7 = scalar_select 0, %s6, %s4
  $region1: #{tpu_custom_call.1} parent=0
    #allocation2 [shape = 'u8[4096]{0}', space=vmem, size = 0x1000, scoped, tag = 'input window, operand 0, single buffered']
    #allocation3 [shape = 's32[1]{0}', space=sflag, size = 0x4, scoped, tag = 'scoped memory for tpu_custom_call.1']
    #allocation4 [shape = 's32[1]{0}', space=sflag, size = 0x4, scoped, tag = 'scoped memory for tpu_custom_call.1']
    #allocation5 [shape = 'u8[16384]{0}', space=vmem, size = 0x4000, scoped, tag = 'input window, operand 1, single buffered']
    #allocation6 [shape = 's32[1]{0}', space=sflag, size = 0x4, scoped, tag = 'scoped memory for tpu_custom_call.1']
    #allocation7 [shape = 'u8[4096]{0}', space=vmem, size = 0x1000, scoped, tag = 'input window, operand 2, single buffered']
    #allocation8 [shape = 'u8[4096]{0}', space=vmem, size = 0x1000, scoped, tag = 'output window, operand 0, single buffered']
    %8 = vsyncpa [#allocation3], 0
    %9 = vsyncpa [#allocation6], 0
    %10 = vsyncpa [#allocation4], 0
    // Predicated region
    $region2: #{tpu_custom_call.1} parent=1 // pred_check
      _
    $region3: #{tpu_custom_call.1} parent=1 // pred_check_branch
      %12 = sbr.rel (0) target = $region5
    $region4: #{tpu_custom_call.1} parent=1 // pred_region
      %s14 = ssub.s32 128, 128
      %15 = vsyncadd [#allocation3], %s14
      %s17 = sshll.u32 [#allocation2], 4
      %s18 = int_to_ptr.vmem [resolvable:$true] %s17
      %20 = dma.hbm_to_vmem [thread:$0]  %s0, 128, %s18, [#allocation3]
    $region5: #{tpu_custom_call.1} parent=1 // pred_fallthru
      _
    // Predicated region
    $region6: #{tpu_custom_call.1} parent=1 // pred_check
      _
    $region7: #{tpu_custom_call.1} parent=1 // pred_check_branch
      %22 = sbr.rel (0) target = $region9
    $region8: #{tpu_custom_call.1} parent=1 // pred_region
      %s24 = ssub.s32 512, 512
      %25 = vsyncadd [#allocation6], %s24
      %s26 = sshll.u32 [#allocation5], 4
      %s27 = int_to_ptr.vmem [resolvable:$true] %s26
      %32 = dma.hbm_to_vmem [thread:$0]  %s1, 512, %s27, [#allocation6], 128, 128, 8
    $region9: #{tpu_custom_call.1} parent=1 // pred_fallthru
      _
    // Predicated region
    $region10: #{tpu_custom_call.1} parent=1 // pred_check
      _
    $region11: #{tpu_custom_call.1} parent=1 // pred_check_branch
      %34 = sbr.rel (0) target = $region13
    $region12: #{tpu_custom_call.1} parent=1 // pred_region
      %s36 = ssub.s32 128, 128
      %37 = vsyncadd [#allocation6], %s36
      %s39 = sshll.u32 [#allocation7], 4
      %s40 = int_to_ptr.vmem [resolvable:$true] %s39
      %42 = dma.hbm_to_vmem [thread:$0]  %s2, 128, %s40, [#allocation6]
    $region13: #{tpu_custom_call.1} parent=1 // pred_fallthru
      _
    // Predicated region
    $region14: #{tpu_custom_call.1} parent=1 // pred_check
      _
    $region15: #{tpu_custom_call.1} parent=1 // pred_check_branch
      %44 = sbr.rel (0) target = $region17
    $region16: #{tpu_custom_call.1} parent=1 // pred_region
      %45 = dma.done [#allocation3], 128
    $region17: #{tpu_custom_call.1} parent=1 // pred_fallthru
      _
    // Predicated region
    $region18: #{tpu_custom_call.1} parent=1 // pred_check
      _
    $region19: #{tpu_custom_call.1} parent=1 // pred_check_branch
      %47 = sbr.rel (0) target = $region21
    $region20: #{tpu_custom_call.1} parent=1 // pred_region
      %48 = dma.done [#allocation6], 512
    $region21: #{tpu_custom_call.1} parent=1 // pred_fallthru
      _
    // Predicated region
    $region22: #{tpu_custom_call.1} parent=1 // pred_check
      _
    $region23: #{tpu_custom_call.1} parent=1 // pred_check_branch
      %50 = sbr.rel (0) target = $region25
    $region24: #{tpu_custom_call.1} parent=1 // pred_region
      %51 = dma.done [#allocation6], 128
    $region25: #{tpu_custom_call.1} parent=1 // pred_fallthru
      _
    %v52 = vld [vmem:[#allocation7] sm:$0xff]
    %v53 = vld [vmem:[#allocation2] sm:$0xff]
    %v54 = vlaneseq
    %v55 = vshrl.u32 %v54, 7
    %v56 = vsub.s32 0, %v55
    %v57 = vrot.slane %v53, %v56
    %v58 = vmul.f32 %v57, %v52
    %v59 = vlaneseq
    %v60 = vshrl.u32 %v59, 7
    %v61 = vsub.s32 1, %v60
    %v62 = vrot.slane %v53, %v61
    %v63 = vadd.f32 %v58, %v62
    %v64 = vlaneseq
    %v65 = vshrl.u32 %v64, 7
    %v66 = vsub.s32 3, %v65
    %v67 = vrot.slane %v53, %v66
    %v68 = vmul.f32 %v67, %v52
    %v69 = vlaneseq
    %v70 = vshrl.u32 %v69, 7
    %v71 = vsub.s32 4, %v70
    %v72 = vrot.slane %v53, %v71
    %v73 = vadd.f32 %v68, %v72
    %v74 = vand.u32 2147483647, %v73
    %vm75 = vcmp.le.f32.partialorder %v74, 0.7853982
    %vm76 = vcmp.lt.s32.totalorder %v73, 0
    %v77 = vand.u32 %v73, 2139095040
    %v78 = vshrl.u32 %v77, 23
    %v79 = vsub.s32 %v78, 127
    %v80 = vand.u32 2147483647, %v73
    %v81 = vand.u32 %v80, 8388607
    %v82 = vor.u32 %v81, 8388608
    %v83 = vsub.s32 0, %v82
    %v84 = vadd.s32 %v79, 1
    %vm85 = vcmp.gt.s32.totalorder %v84, 0
    %v86 = vsel %vm85, %v84, 0
    %v87 = vshrl.u32 %v86, 5
    %v88 = vand.u32 %v86, 31
    %v89 = vsub.s32 32, %v88
    %v90 = vshrl.u32 683565275, %v89
    %v91 = vshll.u32 683565275, %v88
    %v92 = vshrl.u32 2475754826, %v89
    %v93 = vor.u32 %v91, %v92
    %v94 = vshll.u32 2475754826, %v88
    %v95 = vshrl.u32 2131351028, %v89
    %v96 = vor.u32 %v94, %v95
    %v97 = vshll.u32 2131351028, %v88
    %v98 = vshrl.u32 2102212464, %v89
    %v99 = vor.u32 %v97, %v98
    %v100 = vshll.u32 2102212464, %v88
    %v101 = vshrl.u32 920167782, %v89
    %v102 = vor.u32 %v100, %v101
    %v103 = vshll.u32 920167782, %v88
    %v104 = vshrl.u32 1326507024, %v89
    %v105 = vor.u32 %v103, %v104
    %vm106 = vcmp.lt.s32.totalorder %v87, 1
    %vm107 = vcmp.lt.s32.totalorder %v87, 2
    %vm108 = vcmp.lt.s32.totalorder %v87, 3
    %vm109 = vcmp.lt.s32.totalorder %v87, 4
    %v110 = vsel %vm106, %v90, %v93
    %v111 = vsel %vm109, %v99, 2102212464
    %v112 = vsel %vm108, %v96, %v111
    %v113 = vsel %vm107, %v110, %v112
    %v114 = vsel %vm106, %v93, %v96
    %v115 = vsel %vm109, %v102, 920167782
    %v116 = vsel %vm108, %v99, %v115
    %v117 = vsel %vm107, %v114, %v116
    %v118 = vsel %vm106, %v96, %v99
    %v119 = vsel %vm109, %v105, 1326507024
    %v120 = vsel %vm108, %v102, %v119
    %v121 = vsel %vm107, %v118, %v120
    %v122 = vshll.u32 %v82, 8
    %v123 = vmul.u32.u64.compose %v122, %v121
    %v124 = vextract.low.u32 %v123
    %v125 = vextract.high.u32 %v123
    %v126 = vmul.u32.u64.compose %v122, %v117
    %v127 = vextract.low.u32 %v126
    %v128 = vextract.high.u32 %v126
    %v129 = vmul.u32 %v122, %v113
    %v130 = vadd.s32 %v125, %v127
    %vm131 = vc.u32 %v125, %v127
    %v132 = vadd.s32 %v128, 1
    %v133 = vsel %vm131, %v132, %v128
    %v134 = vadd.s32 %v129, %v133
    %v135 = vadd.s32 %v134, 536870912
    %v136 = vshrl.u32 %v135, 30
    %v137 = vshll.u32 %v136, 30
    %v138 = vsub.s32 %v134, %v137
    %vm139 = vcmp.lt.s32.totalorder %v138, 0
    %v140 = vsub.s32 0, %v138
    %v141 = vsel %vm139, %v140, %v138
    %v142 = vclz %v141
    %v143 = vsub.s32 %v142, 2
    %vm144 = vcmp.gt.s32.totalorder 0, %v143
    %v145 = vsel %vm144, 0, %v143
    %v146 = vsub.s32 32, %v145
    %v147 = vshll.u32 %v138, %v145
    %v148 = vshrl.u32 %v130, %v146
    %v149 = vor.u32 %v147, %v148
    %v150 = vsub.s32 4294967266, %v145
    %v151 = vadd.s32 %v150, 127
    %v152 = vshll.u32 %v151, 23
    %v153 = vor.u32 4788187, %v152
    %v154 = vand.u32 2147483647, %v153
    %v156 = vcvt.s32.f32 %v149
    %v157 = vmul.f32 %v156, %v154
    %v158 = vxor.u32 %v157, 2147483648
    %v159 = vsel %vm76, %v158, %v157
    %v160 = vsub.s32 4, %v136
    %v161 = vsel %vm76, %v160, %v136
    %v162 = vsel %vm75, %v73, %v159
    %v163 = vsel %vm75, 0, %v161
    %v164 = vcosq.f32.pop %v162
    %v165 = vsinq.f32.pop %v162
    %vm166 = vweird.f32 %v73
    %v167 = vadd.s32 %v163, 3
    %v168 = vand.u32 %v167, 3
    %vm169 = vcmp.lt.s32.totalorder %v168, 2
    %vm170 = vcmp.eq.s32.totalorder %v168, 0
    %v171 = vxor.u32 %v165, 2147483648
    %v172 = vsel %vm170, %v164, %v171
    %vm173 = vcmp.eq.s32.totalorder %v168, 2
    %v174 = vxor.u32 %v164, 2147483648
    %v175 = vsel %vm173, %v174, %v165
    %v176 = vsel %vm169, %v172, %v175
    %v177 = vsel %vm166, nan, %v176
    %v178 = vlaneseq
    %v179 = vshrl.u32 %v178, 7
    %v180 = vsub.s32 2, %v179
    %v181 = vrot.slane %v53, %v180
    %v182 = vmul.f32 %v181, %v177
    %v183 = vadd.f32 %v63, %v182
    %v184 = vld [vmem:[#allocation5] sm:$0xff]
    %v185 = vld [vmem:[#allocation5 + $0x8] sm:$0xff]
    %v186 = vld [vmem:[#allocation5 + $0x10] sm:$0xff]
    %v187 = vld [vmem:[#allocation5 + $0x18] sm:$0xff]
    %vm188 = vcmask 261120
    %v190 = vsel %vm188, %v183, 0
    %192 = vmatprep.subr.mxu0 0.0
    %193 = vmatpush1.msra.mxu0 %v184
    %194 = vmatprep.subr.mxu0 0.0
    %195 = vmatpush1.msra.mxu0 %v185
    %196 = vmatprep.subr.mxu0 0.0
    %197 = vmatpush1.msra.mxu0 %v186
    %198 = vmatprep.subr.mxu0 0.0
    %199 = vmatpush1.msra.mxu0 %v187
    %200 = vmatprep.subr.mxu0 0.0
    %201 = vmatpush1.msra.mxu0 0.0
    %202 = vmatprep.subr.mxu0 0.0
    %203 = vmatpush1.msra.mxu0 0.0
    %204 = vmatprep.subr.mxu0 0.0
    %205 = vmatpush1.msra.mxu0 0.0
    %206 = vmatprep.subr.mxu0 0.0
    %207 = vmatpush1.msra.mxu0 0.0
    %208 = vmatprep.subr.mxu0 0.0
    %209 = vmatpush1.msra.mxu0 0.0
    %210 = vmatprep.subr.mxu0 0.0
    %211 = vmatpush1.msra.mxu0 0.0
    %212 = vmatprep.subr.mxu0 0.0
    %213 = vmatpush1.msra.mxu0 0.0
    %214 = vmatprep.subr.mxu0 0.0
    %215 = vmatpush1.msra.mxu0 0.0
    %216 = vmatprep.subr.mxu0 0.0
    %217 = vmatpush1.msra.mxu0 0.0
    %218 = vmatprep.subr.mxu0 0.0
    %219 = vmatpush1.msra.mxu0 0.0
    %220 = vmatprep.subr.mxu0 0.0
    %221 = vmatpush1.msra.mxu0 0.0
    %222 = vmatprep.subr.mxu0 0.0
    %223 = vmatpush1.msra.mxu0 0.0
    %224 = vmatprep.subr.mxu0 0.0
    %225 = vmatpush1.msra.mxu0 0.0
    %226 = vmatprep.subr.mxu0 0.0
    %227 = vmatpush1.msra.mxu0 0.0
    %228 = vmatprep.subr.mxu0 0.0
    %229 = vmatpush1.msra.mxu0 0.0
    %230 = vmatprep.subr.mxu0 0.0
    %231 = vmatpush1.msra.mxu0 0.0
    %232 = vmatprep.subr.mxu0 0.0
    %233 = vmatpush1.msra.mxu0 0.0
    %234 = vmatprep.subr.mxu0 0.0
    %235 = vmatpush1.msra.mxu0 0.0
    %236 = vmatprep.subr.mxu0 0.0
    %237 = vmatpush1.msra.mxu0 0.0
    %238 = vmatprep.subr.mxu0 0.0
    %239 = vmatpush1.msra.mxu0 0.0
    %240 = vmatprep.subr.mxu0 0.0
    %241 = vmatpush1.msra.mxu0 0.0
    %242 = vmatprep.subr.mxu0 0.0
    %243 = vmatpush1.msra.mxu0 0.0
    %244 = vmatprep.subr.mxu0 0.0
    %245 = vmatpush1.msra.mxu0 0.0
    %246 = vmatprep.subr.mxu0 0.0
    %247 = vmatpush1.msra.mxu0 0.0
    %248 = vmatprep.subr.mxu0 0.0
    %249 = vmatpush1.msra.mxu0 0.0
    %250 = vmatprep.subr.mxu0 0.0
    %251 = vmatpush1.msra.mxu0 0.0
    %252 = vmatprep.subr.mxu0 0.0
    %253 = vmatpush1.msra.mxu0 0.0
    %254 = vmatprep.subr.mxu0 0.0
    %255 = vmatpush1.msra.mxu0 0.0
    %256 = vmatprep.mubr.f32.mxu0 0.0
    %257 = vmatmul.mubr.f32.gmra.mrb[0].mxu0 %v190
    %v258 = vpop.f32.mrb[0].mxu0
    %v259 = vadd.f32 0.0, %v258
    %v260 = vpop.f32.mrb[0].mxu0
    %261 = vdwg.mxu0
    %262 = vst [vmem:[#allocation8] sm:$0xff] %v259
    // Predicated region
    $region26: #{tpu_custom_call.1} parent=1 // pred_check
      _
    $region27: #{tpu_custom_call.1} parent=1 // pred_check_branch
      %264 = sbr.rel (0) target = $region29
    $region28: #{tpu_custom_call.1} parent=1 // pred_region
      %s266 = ssub.s32 128, 128
      %267 = vsyncadd [#allocation4], %s266
      %s269 = sshll.u32 [#allocation8], 4
      %s270 = int_to_ptr.vmem [resolvable:$true] %s269
      %272 = dma.vmem_to_hbm [thread:$0]  %s270, 128, %s3, [#allocation4]
    $region29: #{tpu_custom_call.1} parent=1 // pred_fallthru
      _
    // Predicated region
    $region30: #{tpu_custom_call.1} parent=1 // pred_check
      _
    $region31: #{tpu_custom_call.1} parent=1 // pred_check_branch
      %274 = sbr.rel (0) target = $region33
    $region32: #{tpu_custom_call.1} parent=1 // pred_region
      %275 = dma.done [#allocation4], 128
    $region33: #{tpu_custom_call.1} parent=1 // pred_fallthru
      _
    %276 = vsyncpa [#allocation3], 1
    %277 = vsyncpa [#allocation6], 1
    %278 = vsyncpa [#allocation4], 1

</llo_original>
